<compile_context>
chip_gen: v6e
topology: v6e:2x2x1
jax: 0.10.0
libtpu: 0.0.40
codegen_flags: <defaults>
</compile_context>

<pallas_src>
import numpy as np
import jax
import jax.numpy as jnp
from jax.experimental import pallas as pl
from jax.experimental.pallas import tpu as pltpu

# ---- problem configuration (BasicConv(in_planes=4, out_planes=8, kernel_size=3, padding=1)) ----
N, CIN, H, W = 2, 4, 16, 16
COUT, KH, KW = 8, 3, 3
STRIDE, PAD = 1, 1          # stride=1, padding=1, dilation=1, groups=1, bias=False
BN_EPS = 1e-5
# TODO(synk): kernel/weight expansion assumes stride=1, dilation=1, groups=1 (the tested
# config); other BasicConv configurations need a different patch/weight expansion.


def basic_conv_kernel(xs_ref, b_ref, gamma_ref, beta_ref, o_ref):
    """xs_ref   : (N*H, KH*Wp*Cin)   partial-im2col patches (lane-friendly layout)
       b_ref    : (KH*Wp*Cin, W*Cout) Toeplitz-expanded conv weights
       gamma_ref: (1, Cout), beta_ref: (1, Cout)  BatchNorm affine params
       o_ref    : (N*H, W*Cout)      lane-dense output (last dim = 128 lanes)
    """
    rows = xs_ref.shape[0]
    wcout = o_ref.shape[1]
    cout = gamma_ref.shape[1]
    w_out = wcout // cout

    # ---- convolution: one MXU matmul, f32 accumulation, lane-dense result ----
    acc = jnp.dot(xs_ref[...], b_ref[...], preferred_element_type=jnp.float32)

    # ---- BatchNorm2d (training-mode biased batch stats) + ReLU, fused epilogue ----
    # One sweep over acc for per-lane sum and sum-of-squares (var = E[x^2] - E[x]^2).
    s1 = jnp.sum(acc, axis=0, keepdims=True)          # (1, W*Cout)
    s2 = jnp.sum(acc * acc, axis=0, keepdims=True)    # (1, W*Cout)

    # Fold the W copies of each channel with tiny 0/1 matmuls instead of lane reshapes.
    lane_f = jax.lax.broadcasted_iota(jnp.int32, (wcout, cout), 0) % cout
    chan_f = jax.lax.broadcasted_iota(jnp.int32, (wcout, cout), 1)
    fold = (lane_f == chan_f).astype(jnp.float32)      # (W*Cout, Cout): lane -> channel
    chan_s = jax.lax.broadcasted_iota(jnp.int32, (cout, wcout), 0)
    lane_s = jax.lax.broadcasted_iota(jnp.int32, (cout, wcout), 1) % cout
    spread = (lane_s == chan_s).astype(jnp.float32)    # (Cout, W*Cout): channel -> lane

    cnt = jnp.float32(rows * w_out)                    # N*H*W elements per channel
    mean = jnp.dot(s1, fold, preferred_element_type=jnp.float32) / cnt   # (1, Cout)
    ex2 = jnp.dot(s2, fold, preferred_element_type=jnp.float32) / cnt    # (1, Cout)
    var = ex2 - mean * mean                            # biased batch variance
    scale = gamma_ref[...] * jax.lax.rsqrt(var + BN_EPS)                 # (1, Cout)
    shift = beta_ref[...] - mean * scale                                 # (1, Cout)
    scale_l = jnp.dot(scale, spread, preferred_element_type=jnp.float32)  # (1, W*Cout)
    shift_l = jnp.dot(shift, spread, preferred_element_type=jnp.float32)  # (1, W*Cout)

    # y = max(acc * scale + shift, 0): one FMA + max per element, unmasked 128-lane store.
    o_ref[...] = jnp.maximum(acc * scale_l + shift_l, 0.0).astype(o_ref.dtype)


def _expand_weights(w_oihw, wp, cin, w_out):
    """Toeplitz-expand (Cout, Cin, KH, KW) conv weights into a (KH*Wp*Cin, W*Cout)
    matrix so the whole convolution is a single matmul with a lane-dense output dim.
    (In a real module this is weight prep that would be done once at init time.)"""
    kh_i, kw_i, ci_i, co_i, w_i = np.meshgrid(
        np.arange(KH), np.arange(KW), np.arange(cin), np.arange(COUT),
        np.arange(w_out), indexing="ij")
    rows = kh_i * (wp * cin) + (w_i * STRIDE + kw_i) * cin + ci_i
    cols = w_i * COUT + co_i
    vals = w_oihw[co_i, ci_i, kh_i, kw_i]              # gather with static indices
    b = jnp.zeros((KH * wp * cin, w_out * COUT), jnp.float32)
    return b.at[rows, cols].set(vals.astype(jnp.float32))


def basic_conv(x_nchw, w_oihw, gamma, beta):
    """PyTorch-equivalent BasicConv.forward. x_nchw: (N, Cin, H, W) -> (N, Cout, H, W)."""
    # Layout glue (eligible for fusion into the pallas_call input).
    x_nhwc = jnp.transpose(x_nchw, (0, 2, 3, 1))                       # NCHW -> NHWC
    x_pad = jnp.pad(x_nhwc, ((0, 0), (PAD, PAD), (PAD, PAD), (0, 0)))
    n, hp, wp, cin = x_pad.shape
    h_out = (hp - KH) // STRIDE + 1
    w_out = (wp - KW) // STRIDE + 1

    xf = x_pad.reshape(n, hp, wp * cin)                # fold (W, Cin) into the lane dim
    # Partial im2col along H only (the KW taps live inside the expanded weights).
    xs = jnp.concatenate(
        [xf[:, kh:kh + h_out, :].reshape(n * h_out, wp * cin) for kh in range(KH)],
        axis=1)                                        # (N*H, KH*Wp*Cin) = (32, 216)

    b = _expand_weights(w_oihw, wp, cin, w_out)        # (216, 128)
    gamma2 = gamma.reshape(1, -1).astype(jnp.float32)
    beta2 = beta.reshape(1, -1).astype(jnp.float32)

    out_flat = pl.pallas_call(
        basic_conv_kernel,
        out_shape=jax.ShapeDtypeStruct((n * h_out, w_out * COUT), jnp.float32),
        in_specs=[
            pl.BlockSpec(memory_space=pltpu.MemorySpace.VMEM),
            pl.BlockSpec(memory_space=pltpu.MemorySpace.VMEM),
            pl.BlockSpec(memory_space=pltpu.MemorySpace.VMEM),
            pl.BlockSpec(memory_space=pltpu.MemorySpace.VMEM),
        ],
        out_specs=pl.BlockSpec(memory_space=pltpu.MemorySpace.VMEM),
        compiler_params=pltpu.CompilerParams(
            allow_input_fusion=[True, False, False, False]),
    )(xs, b, gamma2, beta2)

    out_nhwc = out_flat.reshape(n, h_out, w_out, COUT)
    return jnp.transpose(out_nhwc, (0, 3, 1, 2))                       # NHWC -> NCHW


def reference(x_nchw, w_oihw, gamma, beta):
    """Pure-JAX reference matching PyTorch BasicConv.forward (training-mode BN)."""
    y = jax.lax.conv_general_dilated(
        x_nchw, w_oihw, window_strides=(STRIDE, STRIDE),
        padding=((PAD, PAD), (PAD, PAD)),
        dimension_numbers=("NCHW", "OIHW", "NCHW"))
    mean = jnp.mean(y, axis=(0, 2, 3), keepdims=True)
    var = jnp.mean((y - mean) ** 2, axis=(0, 2, 3), keepdims=True)
    y = (y - mean) * jax.lax.rsqrt(var + BN_EPS)
    y = y * gamma.reshape(1, -1, 1, 1) + beta.reshape(1, -1, 1, 1)
    return jnp.maximum(y, 0.0)


if __name__ == "__main__":
    key = jax.random.PRNGKey(0)
    kx, kw = jax.random.split(key)

    x = jax.random.normal(kx, (N, CIN, H, W), dtype=jnp.float32)
    # Conv2d weight shape (Cout, Cin, KH, KW); deterministic init, no bias.
    w = jax.random.normal(kw, (COUT, CIN, KH, KW), dtype=jnp.float32) * 0.1
    # BatchNorm2d default affine init: gamma=1, beta=0.
    gamma = jnp.ones((COUT,), jnp.float32)
    beta = jnp.zeros((COUT,), jnp.float32)

    out = basic_conv(x, w, gamma, beta)
    out = jax.block_until_ready(out)

    ref = jax.block_until_ready(reference(x, w, gamma, beta))
    assert out.shape == (N, COUT, H, W)
    assert jnp.allclose(out, ref, atol=1e-4, rtol=1e-4), "mismatch vs reference"

    print("KERNEL_OK")
</pallas_src>

<mosaic_0001>
module attributes {stable_mosaic.version = 11 : i64} {
  func.func @basic_conv_kernel(%arg0: memref<32x216xf32, #tpu.memory_space<vmem>>, %arg1: memref<216x128xf32, #tpu.memory_space<vmem>>, %arg2: memref<1x8xf32, #tpu.memory_space<vmem>>, %arg3: memref<1x8xf32, #tpu.memory_space<vmem>>, %arg4: memref<32x128xf32, #tpu.memory_space<vmem>>) attributes {dimension_semantics = [], scalar_prefetch = 0 : i64, scratch_operands = 0 : i64, tpu.core_type = #tpu.core_type<tc>} {
    %c0 = arith.constant 0 : index
    %c0_0 = arith.constant 0 : index
    %0 = vector.load %arg0[%c0, %c0_0] : memref<32x216xf32, #tpu.memory_space<vmem>>, vector<32x216xf32>
    %c0_1 = arith.constant 0 : index
    %c0_2 = arith.constant 0 : index
    %1 = vector.load %arg1[%c0_1, %c0_2] : memref<216x128xf32, #tpu.memory_space<vmem>>, vector<216x128xf32>
    %cst = arith.constant dense<0.000000e+00> : vector<32x128xf32>
    %2 = tpu.matmul %0, %1, %cst {dimension_numbers = #tpu.dot_dimension_numbers<[1], [0], [0], [1], [0, 0, 1, 1], [], []>} : vector<32x216xf32>, vector<216x128xf32>, vector<32x128xf32> -> vector<32x128xf32>
    %cst_3 = arith.constant dense<0.000000e+00> : vector<128xf32>
    %3 = vector.multi_reduction <add>, %2, %cst_3 [0] : vector<32x128xf32> to vector<128xf32>
    %4 = vector.shape_cast %3 : vector<128xf32> to vector<1x128xf32>
    %5 = arith.mulf %2, %2 : vector<32x128xf32>
    %cst_4 = arith.constant dense<0.000000e+00> : vector<128xf32>
    %6 = vector.multi_reduction <add>, %5, %cst_4 [0] : vector<32x128xf32> to vector<128xf32>
    %7 = vector.shape_cast %6 : vector<128xf32> to vector<1x128xf32>
    %8 = tpu.iota {dimensions = array<i32: 0>} : vector<128x8xi32>
    %c8_i32 = arith.constant 8 : i32
    %c0_i32 = arith.constant 0 : i32
    %9 = arith.cmpi eq, %c8_i32, %c0_i32 : i32
    %c1_i32 = arith.constant 1 : i32
    %10 = arith.select %9, %c1_i32, %c8_i32 : i32
    %11 = vector.broadcast %10 : i32 to vector<128x8xi32>
    %12 = arith.remsi %8, %11 : vector<128x8xi32>
    %c0_i32_5 = arith.constant 0 : i32
    %13 = vector.broadcast %c0_i32_5 : i32 to vector<128x8xi32>
    %14 = arith.cmpi ne, %12, %13 : vector<128x8xi32>
    %c0_i32_6 = arith.constant 0 : i32
    %15 = vector.broadcast %c0_i32_6 : i32 to vector<128x8xi32>
    %16 = arith.cmpi slt, %12, %15 : vector<128x8xi32>
    %c0_i32_7 = arith.constant 0 : i32
    %17 = arith.cmpi slt, %10, %c0_i32_7 : i32
    %18 = vector.broadcast %17 : i1 to vector<128x8xi1>
    %19 = vector.broadcast %18 : vector<128x8xi1> to vector<128x8xi1>
    %20 = arith.xori %16, %19 : vector<128x8xi1>
    %21 = arith.andi %20, %14 : vector<128x8xi1>
    %22 = vector.broadcast %10 : i32 to vector<128x8xi32>
    %23 = arith.addi %12, %22 : vector<128x8xi32>
    %24 = arith.select %21, %23, %12 : vector<128x8xi1>, vector<128x8xi32>
    %25 = tpu.iota {dimensions = array<i32: 1>} : vector<128x8xi32>
    %26 = arith.cmpi eq, %24, %25 : vector<128x8xi32>
    %27 = arith.extui %26 : vector<128x8xi1> to vector<128x8xi32>
    %28 = arith.sitofp %27 : vector<128x8xi32> to vector<128x8xf32>
    %29 = tpu.iota {dimensions = array<i32: 0>} : vector<8x128xi32>
    %30 = tpu.iota {dimensions = array<i32: 1>} : vector<8x128xi32>
    %c8_i32_8 = arith.constant 8 : i32
    %c0_i32_9 = arith.constant 0 : i32
    %31 = arith.cmpi eq, %c8_i32_8, %c0_i32_9 : i32
    %c1_i32_10 = arith.constant 1 : i32
    %32 = arith.select %31, %c1_i32_10, %c8_i32_8 : i32
    %33 = vector.broadcast %32 : i32 to vector<8x128xi32>
    %34 = arith.remsi %30, %33 : vector<8x128xi32>
    %c0_i32_11 = arith.constant 0 : i32
    %35 = vector.broadcast %c0_i32_11 : i32 to vector<8x128xi32>
    %36 = arith.cmpi ne, %34, %35 : vector<8x128xi32>
    %c0_i32_12 = arith.constant 0 : i32
    %37 = vector.broadcast %c0_i32_12 : i32 to vector<8x128xi32>
    %38 = arith.cmpi slt, %34, %37 : vector<8x128xi32>
    %c0_i32_13 = arith.constant 0 : i32
    %39 = arith.cmpi slt, %32, %c0_i32_13 : i32
    %40 = vector.broadcast %39 : i1 to vector<8x128xi1>
    %41 = vector.broadcast %40 : vector<8x128xi1> to vector<8x128xi1>
    %42 = arith.xori %38, %41 : vector<8x128xi1>
    %43 = arith.andi %42, %36 : vector<8x128xi1>
    %44 = vector.broadcast %32 : i32 to vector<8x128xi32>
    %45 = arith.addi %34, %44 : vector<8x128xi32>
    %46 = arith.select %43, %45, %34 : vector<8x128xi1>, vector<8x128xi32>
    %47 = arith.cmpi eq, %46, %29 : vector<8x128xi32>
    %48 = arith.extui %47 : vector<8x128xi1> to vector<8x128xi32>
    %49 = arith.sitofp %48 : vector<8x128xi32> to vector<8x128xf32>
    %cst_14 = arith.constant dense<0.000000e+00> : vector<1x8xf32>
    %50 = tpu.matmul %4, %28, %cst_14 {dimension_numbers = #tpu.dot_dimension_numbers<[1], [0], [0], [1], [0, 0, 1, 1], [], []>} : vector<1x128xf32>, vector<128x8xf32>, vector<1x8xf32> -> vector<1x8xf32>
    %cst_15 = arith.constant 5.120000e+02 : f32
    %51 = vector.broadcast %cst_15 : f32 to vector<1x8xf32>
    %52 = arith.divf %50, %51 : vector<1x8xf32>
    %cst_16 = arith.constant dense<0.000000e+00> : vector<1x8xf32>
    %53 = tpu.matmul %7, %28, %cst_16 {dimension_numbers = #tpu.dot_dimension_numbers<[1], [0], [0], [1], [0, 0, 1, 1], [], []>} : vector<1x128xf32>, vector<128x8xf32>, vector<1x8xf32> -> vector<1x8xf32>
    %cst_17 = arith.constant 5.120000e+02 : f32
    %54 = vector.broadcast %cst_17 : f32 to vector<1x8xf32>
    %55 = arith.divf %53, %54 : vector<1x8xf32>
    %56 = arith.mulf %52, %52 : vector<1x8xf32>
    %57 = arith.subf %55, %56 : vector<1x8xf32>
    %c0_18 = arith.constant 0 : index
    %c0_19 = arith.constant 0 : index
    %58 = vector.load %arg2[%c0_18, %c0_19] : memref<1x8xf32, #tpu.memory_space<vmem>>, vector<1x8xf32>
    %cst_20 = arith.constant 9.99999974E-6 : f32
    %59 = vector.broadcast %cst_20 : f32 to vector<1x8xf32>
    %60 = arith.addf %57, %59 : vector<1x8xf32>
    %61 = math.rsqrt %60 : vector<1x8xf32>
    %62 = arith.mulf %58, %61 : vector<1x8xf32>
    %c0_21 = arith.constant 0 : index
    %c0_22 = arith.constant 0 : index
    %63 = vector.load %arg3[%c0_21, %c0_22] : memref<1x8xf32, #tpu.memory_space<vmem>>, vector<1x8xf32>
    %64 = arith.mulf %52, %62 : vector<1x8xf32>
    %65 = arith.subf %63, %64 : vector<1x8xf32>
    %cst_23 = arith.constant dense<0.000000e+00> : vector<1x128xf32>
    %66 = tpu.matmul %62, %49, %cst_23 {dimension_numbers = #tpu.dot_dimension_numbers<[1], [0], [0], [1], [0, 0, 1, 1], [], []>} : vector<1x8xf32>, vector<8x128xf32>, vector<1x128xf32> -> vector<1x128xf32>
    %cst_24 = arith.constant dense<0.000000e+00> : vector<1x128xf32>
    %67 = tpu.matmul %65, %49, %cst_24 {dimension_numbers = #tpu.dot_dimension_numbers<[1], [0], [0], [1], [0, 0, 1, 1], [], []>} : vector<1x8xf32>, vector<8x128xf32>, vector<1x128xf32> -> vector<1x128xf32>
    %68 = vector.broadcast %66 : vector<1x128xf32> to vector<32x128xf32>
    %69 = arith.mulf %2, %68 : vector<32x128xf32>
    %70 = vector.broadcast %67 : vector<1x128xf32> to vector<32x128xf32>
    %71 = arith.addf %69, %70 : vector<32x128xf32>
    %cst_25 = arith.constant 0.000000e+00 : f32
    %72 = vector.broadcast %cst_25 : f32 to vector<32x128xf32>
    %73 = arith.maximumf %71, %72 : vector<32x128xf32>
    %c0_26 = arith.constant 0 : index
    %c0_27 = arith.constant 0 : index
    %74 = vector.load %arg4[%c0_26, %c0_27] : memref<32x128xf32, #tpu.memory_space<vmem>>, vector<32x128xf32>
    tpu.vector_store %arg4[%c0_26, %c0_27], %73 {strides = array<i32>} : memref<32x128xf32, #tpu.memory_space<vmem>>, vector<32x128xf32>,
    return
  }
}

</mosaic_0001>

<llo_original>
// kernel: tpu_custom_call.1
$region0: #{tpu_custom_call.1}
  #allocation0 [shape = 'u32[]', space=smem, size = 0x4, offset = 0x4, fixed_abs, tag = 'smem constant byte address 0x4 - core index']
  #allocation1 [shape = 'u32[144,128]{1,0:T(1,128)}', space=vmem, size = 0x12000, scoped, tag = 'internal scratch']
  %s0 = inlined_call_operand.hbm [shape: f32[32,216], index: 0, kind: input, shape index: {}]
  %s1 = inlined_call_operand.hbm [shape: f32[216,128], index: 1, kind: input, shape index: {}]
  %s2 = inlined_call_operand.vmem [shape: f32[1,8], index: 2, kind: input, shape index: {}]
  %s3 = inlined_call_operand.vmem [shape: f32[1,8], index: 3, kind: input, shape index: {}]
  %s4 = inlined_call_operand.hbm [shape: f32[32,128], index: 4, kind: output, shape index: {}]
  %s5 = sld [smem:[#allocation0]]
  $region34: #{tpu_custom_call.1} parent=0
    _
  %s7 = ssub.s32 1, %s5
  %s8 = scalar_select 0, %s7, %s5
  $region1: #{tpu_custom_call.1} parent=0
    #allocation2 [shape = 'u8[32768]{0}', space=vmem, size = 0x8000, scoped, tag = 'input window, operand 0, single buffered']
    #allocation3 [shape = 's32[1]{0}', space=sflag, size = 0x4, scoped, tag = 'scoped memory for tpu_custom_call.1']
    #allocation4 [shape = 's32[1]{0}', space=sflag, size = 0x4, scoped, tag = 'scoped memory for tpu_custom_call.1']
    #allocation5 [shape = 'u8[110592]{0}', space=vmem, size = 0x1b000, scoped, tag = 'input window, operand 1, single buffered']
    #allocation6 [shape = 's32[1]{0}', space=sflag, size = 0x4, scoped, tag = 'scoped memory for tpu_custom_call.1']
    #allocation7 [shape = 'u8[16384]{0}', space=vmem, size = 0x4000, scoped, tag = 'output window, operand 0, single buffered']
    %9 = vsyncpa [#allocation3], 0
    %10 = vsyncpa [#allocation6], 0
    %11 = vsyncpa [#allocation4], 0
    // Predicated region
    $region2: #{tpu_custom_call.1} parent=1 // pred_check
      _
    $region3: #{tpu_custom_call.1} parent=1 // pred_check_branch
      %13 = sbr.rel (0) target = $region5
    $region4: #{tpu_custom_call.1} parent=1 // pred_region
      %s15 = ssub.s32 1024, 1024
      %16 = vsyncadd [#allocation3], %s15
      %s17 = sshll.u32 [#allocation2], 4
      %s18 = int_to_ptr.vmem [resolvable:$true] %s17
      %23 = dma.hbm_to_vmem [thread:$0]  %s0, 1024, %s18, [#allocation3], 256, 256, 16
    $region5: #{tpu_custom_call.1} parent=1 // pred_fallthru
      _
    // Predicated region
    $region6: #{tpu_custom_call.1} parent=1 // pred_check
      _
    $region7: #{tpu_custom_call.1} parent=1 // pred_check_branch
      %25 = sbr.rel (0) target = $region9
    $region8: #{tpu_custom_call.1} parent=1 // pred_region
      %s27 = ssub.s32 3456, 3456
      %28 = vsyncadd [#allocation6], %s27
      %s29 = sshll.u32 [#allocation5], 4
      %s30 = int_to_ptr.vmem [resolvable:$true] %s29
      %35 = dma.hbm_to_vmem [thread:$0]  %s1, 3456, %s30, [#allocation6], 128, 128, 8
    $region9: #{tpu_custom_call.1} parent=1 // pred_fallthru
      _
    // Predicated region
    $region10: #{tpu_custom_call.1} parent=1 // pred_check
      _
    $region11: #{tpu_custom_call.1} parent=1 // pred_check_branch
      %37 = sbr.rel (0) target = $region13
    $region12: #{tpu_custom_call.1} parent=1 // pred_region
      _
    $region13: #{tpu_custom_call.1} parent=1 // pred_fallthru
      _
    // Predicated region
    $region14: #{tpu_custom_call.1} parent=1 // pred_check
      _
    $region15: #{tpu_custom_call.1} parent=1 // pred_check_branch
      %39 = sbr.rel (0) target = $region17
    $region16: #{tpu_custom_call.1} parent=1 // pred_region
      _
    $region17: #{tpu_custom_call.1} parent=1 // pred_fallthru
      _
    // Predicated region
    $region18: #{tpu_custom_call.1} parent=1 // pred_check
      _
    $region19: #{tpu_custom_call.1} parent=1 // pred_check_branch
      %41 = sbr.rel (0) target = $region21
    $region20: #{tpu_custom_call.1} parent=1 // pred_region
      %42 = dma.done [#allocation3], 1024
    $region21: #{tpu_custom_call.1} parent=1 // pred_fallthru
      _
    // Predicated region
    $region22: #{tpu_custom_call.1} parent=1 // pred_check
      _
    $region23: #{tpu_custom_call.1} parent=1 // pred_check_branch
      %44 = sbr.rel (0) target = $region25
    $region24: #{tpu_custom_call.1} parent=1 // pred_region
      %45 = dma.done [#allocation6], 3456
    $region25: #{tpu_custom_call.1} parent=1 // pred_fallthru
      _
    %v46 = vld [vmem:[#allocation2] sm:$0xff]
    %v47 = vld [vmem:[#allocation2 + $0x8] sm:$0xff]
    %v48 = vld [vmem:[#allocation2 + $0x10] sm:$0xff]
    %v49 = vld [vmem:[#allocation2 + $0x18] sm:$0xff]
    %v50 = vld [vmem:[#allocation2 + $0x20] sm:$0xff]
    %v51 = vld [vmem:[#allocation2 + $0x28] sm:$0xff]
    %v52 = vld [vmem:[#allocation2 + $0x30] sm:$0xff]
    %v53 = vld [vmem:[#allocation2 + $0x38] sm:$0xff]
    %v54 = vld [vmem:[#allocation5] sm:$0xff]
    %v55 = vld [vmem:[#allocation5 + $0x8] sm:$0xff]
    %v56 = vld [vmem:[#allocation5 + $0x10] sm:$0xff]
    %v57 = vld [vmem:[#allocation5 + $0x18] sm:$0xff]
    %v58 = vld [vmem:[#allocation5 + $0x20] sm:$0xff]
    %v59 = vld [vmem:[#allocation5 + $0x28] sm:$0xff]
    %v60 = vld [vmem:[#allocation5 + $0x30] sm:$0xff]
    %v61 = vld [vmem:[#allocation5 + $0x38] sm:$0xff]
    %v62 = vld [vmem:[#allocation5 + $0x40] sm:$0xff]
    %v63 = vld [vmem:[#allocation5 + $0x48] sm:$0xff]
    %v64 = vld [vmem:[#allocation5 + $0x50] sm:$0xff]
    %v65 = vld [vmem:[#allocation5 + $0x58] sm:$0xff]
    %v66 = vld [vmem:[#allocation5 + $0x60] sm:$0xff]
    %v67 = vld [vmem:[#allocation5 + $0x68] sm:$0xff]
    %v68 = vld [vmem:[#allocation5 + $0x70] sm:$0xff]
    %v69 = vld [vmem:[#allocation5 + $0x78] sm:$0xff]
    %v70 = vld [vmem:[#allocation5 + $0x80] sm:$0xff]
    %v71 = vld [vmem:[#allocation5 + $0x88] sm:$0xff]
    %v72 = vld [vmem:[#allocation5 + $0x90] sm:$0xff]
    %v73 = vld [vmem:[#allocation5 + $0x98] sm:$0xff]
    %v74 = vld [vmem:[#allocation5 + $0xa0] sm:$0xff]
    %v75 = vld [vmem:[#allocation5 + $0xa8] sm:$0xff]
    %v76 = vld [vmem:[#allocation5 + $0xb0] sm:$0xff]
    %v77 = vld [vmem:[#allocation5 + $0xb8] sm:$0xff]
    %v78 = vld [vmem:[#allocation5 + $0xc0] sm:$0xff]
    %v79 = vld [vmem:[#allocation5 + $0xc8] sm:$0xff]
    %v80 = vld [vmem:[#allocation5 + $0xd0] sm:$0xff]
    %vm81 = vcmask 719872
    %v83 = vsel %vm81, %v47, 0
    %v86 = vsel %vm81, %v49, 0
    %v89 = vsel %vm81, %v51, 0
    %v92 = vsel %vm81, %v53, 0
    %94 = vmatprep.subr.mxu0 0.0
    %95 = vmatpush1.msra.mxu0 %v69
    %96 = vmatprep.subr.mxu0 0.0
    %97 = vmatpush1.msra.mxu0 %v68
    %98 = vmatprep.subr.mxu0 0.0
    %99 = vmatpush1.msra.mxu0 %v67
    %100 = vmatprep.subr.mxu0 0.0
    %101 = vmatpush1.msra.mxu0 %v66
    %102 = vmatprep.subr.mxu0 0.0
    %103 = vmatpush1.msra.mxu0 %v65
    %104 = vmatprep.subr.mxu0 0.0
    %105 = vmatpush1.msra.mxu0 %v64
    %106 = vmatprep.subr.mxu0 0.0
    %107 = vmatpush1.msra.mxu0 %v63
    %108 = vmatprep.subr.mxu0 0.0
    %109 = vmatpush1.msra.mxu0 %v62
    %110 = vmatprep.subr.mxu0 0.0
    %111 = vmatpush1.msra.mxu0 %v61
    %112 = vmatprep.subr.mxu0 0.0
    %113 = vmatpush1.msra.mxu0 %v60
    %114 = vmatprep.subr.mxu0 0.0
    %115 = vmatpush1.msra.mxu0 %v59
    %116 = vmatprep.subr.mxu0 0.0
    %117 = vmatpush1.msra.mxu0 %v58
    %118 = vmatprep.subr.mxu0 0.0
    %119 = vmatpush1.msra.mxu0 %v57
    %120 = vmatprep.subr.mxu0 0.0
    %121 = vmatpush1.msra.mxu0 %v56
    %122 = vmatprep.subr.mxu0 0.0
    %123 = vmatpush1.msra.mxu0 %v55
    %124 = vmatprep.subr.mxu0 0.0
    %125 = vmatpush1.msra.mxu0 %v54
    %126 = vmatprep.subr.mxu0 0.0
    %127 = vmatpush2.msra.mxu0 0.0
    %128 = vmatprep.subr.mxu0 0.0
    %129 = vmatpush2.msra.mxu0 0.0
    %130 = vmatprep.subr.mxu0 0.0
    %131 = vmatpush2.msra.mxu0 0.0
    %132 = vmatprep.subr.mxu0 0.0
    %133 = vmatpush2.msra.mxu0 0.0
    %134 = vmatprep.subr.mxu0 0.0
    %135 = vmatpush2.msra.mxu0 0.0
    %136 = vmatprep.subr.mxu0 0.0
    %137 = vmatpush2.msra.mxu0 %v80
    %138 = vmatprep.subr.mxu0 0.0
    %139 = vmatpush2.msra.mxu0 %v79
    %140 = vmatprep.subr.mxu0 0.0
    %141 = vmatpush2.msra.mxu0 %v78
    %142 = vmatprep.subr.mxu0 0.0
    %143 = vmatpush2.msra.mxu0 %v77
    %144 = vmatprep.subr.mxu0 0.0
    %145 = vmatpush2.msra.mxu0 %v76
    %146 = vmatprep.subr.mxu0 0.0
    %147 = vmatpush2.msra.mxu0 %v75
    %148 = vmatprep.subr.mxu0 0.0
    %149 = vmatpush2.msra.mxu0 %v74
    %150 = vmatprep.subr.mxu0 0.0
    %151 = vmatpush2.msra.mxu0 %v73
    %152 = vmatprep.subr.mxu0 0.0
    %153 = vmatpush2.msra.mxu0 %v72
    %154 = vmatprep.subr.mxu0 0.0
    %155 = vmatpush2.msra.mxu0 %v71
    %156 = vmatprep.subr.mxu0 0.0
    %157 = vmatpush2.msra.mxu0 %v70
    %158 = vmatprep.mubr.f32.mxu0 %v83
    %159 = vmatmul.mubr.f32.gmra.mxu0 %v46
    %v160 = vpop.f32.mrf.mxu0
    %v161 = vadd.f32 0.0, %v160
    %v162 = vpop.f32.mrf.mxu0
    %163 = vmatprep.mubr.f32.mxu0 %v86
    %164 = vmatmul.mubr.f32.gmra.mxu0 %v48
    %v165 = vpop.f32.mrf.mxu0
    %v166 = vadd.f32 0.0, %v165
    %v167 = vpop.f32.mrf.mxu0
    %168 = vmatprep.mubr.f32.mxu0 %v89
    %169 = vmatmul.mubr.f32.gmra.mxu0 %v50
    %v170 = vpop.f32.mrf.mxu0
    %v171 = vadd.f32 0.0, %v170
    %v172 = vpop.f32.mrf.mxu0
    %173 = vmatprep.mubr.f32.mxu0 %v92
    %174 = vmatmul.mubr.f32.gmra.mxu0 %v52
    %v175 = vpop.f32.mrf.mxu0
    %v176 = vadd.f32 0.0, %v175
    %v177 = vpop.f32.mrf.mxu0
    %178 = vdwg.mxu0
    %v179 = vadd.f32 %v161, %v166
    %v180 = vadd.f32 %v179, %v171
    %v181 = vadd.f32 %v180, %v176
    %v182 = vrot.slane %v181, 4
    %v183 = vadd.f32 %v181, %v182
    %v184 = vrot.slane %v183, 2
    %v185 = vadd.f32 %v183, %v184
    %v186 = vrot.slane %v185, 1
    %v187 = vadd.f32 %v185, %v186
    %v188 = vmul.f32 %v161, %v161
    %v189 = vmul.f32 %v166, %v166
    %v190 = vmul.f32 %v171, %v171
    %v191 = vmul.f32 %v176, %v176
    %v192 = vadd.f32 %v188, %v189
    %v193 = vadd.f32 %v192, %v190
    %v194 = vadd.f32 %v193, %v191
    %v195 = vrot.slane %v194, 4
    %v196 = vadd.f32 %v194, %v195
    %v197 = vrot.slane %v196, 2
    %v198 = vadd.f32 %v196, %v197
    %v199 = vrot.slane %v198, 1
    %v200 = vadd.f32 %v198, %v199
    %v201 = vlaneseq
    %v202 = vshrl.u32 %v201, 7
    %v203 = vadd.s32 %v202, 8
    %v204 = vadd.s32 %v202, 16
    %v205 = vadd.s32 %v202, 24
    %v206 = vadd.s32 %v202, 32
    %v207 = vadd.s32 %v202, 40
    %v208 = vadd.s32 %v202, 48
    %v209 = vadd.s32 %v202, 56
    %v210 = vadd.s32 %v202, 64
    %v211 = vadd.s32 %v202, 72
    %v212 = vadd.s32 %v202, 80
    %v213 = vadd.s32 %v202, 88
    %v214 = vadd.s32 %v202, 96
    %v215 = vadd.s32 %v202, 104
    %v216 = vadd.s32 %v202, 112
    %v217 = vadd.s32 %v202, 120
    %vm218 = vcmp.lt.s32.totalorder %v202, 0
    %v219 = vsub.s32 0, %v202
    %v220 = vsel %vm218, %v219, %v202
    %v221 = vshrl.u32 %v220, 3
    %v222 = vand.u32 %v220, 7
    %v223 = vsub.s32 0, %v222
    %v224 = vsel %vm218, %v223, %v222
    %vm225 = vcmp.lt.s32.totalorder %v203, 0
    %v226 = vsub.s32 0, %v203
    %v227 = vsel %vm225, %v226, %v203
    %v228 = vshrl.u32 %v227, 3
    %v229 = vand.u32 %v227, 7
    %v230 = vsub.s32 0, %v229
    %v231 = vsel %vm225, %v230, %v229
    %vm232 = vcmp.lt.s32.totalorder %v204, 0
    %v233 = vsub.s32 0, %v204
    %v234 = vsel %vm232, %v233, %v204
    %v235 = vshrl.u32 %v234, 3
    %v236 = vand.u32 %v234, 7
    %v237 = vsub.s32 0, %v236
    %v238 = vsel %vm232, %v237, %v236
    %vm239 = vcmp.lt.s32.totalorder %v205, 0
    %v240 = vsub.s32 0, %v205
    %v241 = vsel %vm239, %v240, %v205
    %v242 = vshrl.u32 %v241, 3
    %v243 = vand.u32 %v241, 7
    %v244 = vsub.s32 0, %v243
    %v245 = vsel %vm239, %v244, %v243
    %vm246 = vcmp.lt.s32.totalorder %v206, 0
    %v247 = vsub.s32 0, %v206
    %v248 = vsel %vm246, %v247, %v206
    %v249 = vshrl.u32 %v248, 3
    %v250 = vand.u32 %v248, 7
    %v251 = vsub.s32 0, %v250
    %v252 = vsel %vm246, %v251, %v250
    %vm253 = vcmp.lt.s32.totalorder %v207, 0
    %v254 = vsub.s32 0, %v207
    %v255 = vsel %vm253, %v254, %v207
    %v256 = vshrl.u32 %v255, 3
    %v257 = vand.u32 %v255, 7
    %v258 = vsub.s32 0, %v257
    %v259 = vsel %vm253, %v258, %v257
    %vm260 = vcmp.lt.s32.totalorder %v208, 0
    %v261 = vsub.s32 0, %v208
    %v262 = vsel %vm260, %v261, %v208
    %v263 = vshrl.u32 %v262, 3
    %v264 = vand.u32 %v262, 7
    %v265 = vsub.s32 0, %v264
    %v266 = vsel %vm260, %v265, %v264
    %vm267 = vcmp.lt.s32.totalorder %v209, 0
    %v268 = vsub.s32 0, %v209
    %v269 = vsel %vm267, %v268, %v209
    %v270 = vshrl.u32 %v269, 3
    %v271 = vand.u32 %v269, 7
    %v272 = vsub.s32 0, %v271
    %v273 = vsel %vm267, %v272, %v271
    %vm274 = vcmp.lt.s32.totalorder %v210, 0
    %v275 = vsub.s32 0, %v210
    %v276 = vsel %vm274, %v275, %v210
    %v277 = vshrl.u32 %v276, 3
    %v278 = vand.u32 %v276, 7
    %v279 = vsub.s32 0, %v278
    %v280 = vsel %vm274, %v279, %v278
    %vm281 = vcmp.lt.s32.totalorder %v211, 0
    %v282 = vsub.s32 0, %v211
    %v283 = vsel %vm281, %v282, %v211
    %v284 = vshrl.u32 %v283, 3
    %v285 = vand.u32 %v283, 7
    %v286 = vsub.s32 0, %v285
    %v287 = vsel %vm281, %v286, %v285
    %vm288 = vcmp.lt.s32.totalorder %v212, 0
    %v289 = vsub.s32 0, %v212
    %v290 = vsel %vm288, %v289, %v212
    %v291 = vshrl.u32 %v290, 3
    %v292 = vand.u32 %v290, 7
    %v293 = vsub.s32 0, %v292
    %v294 = vsel %vm288, %v293, %v292
    %vm295 = vcmp.lt.s32.totalorder %v213, 0
    %v296 = vsub.s32 0, %v213
    %v297 = vsel %vm295, %v296, %v213
    %v298 = vshrl.u32 %v297, 3
    %v299 = vand.u32 %v297, 7
    %v300 = vsub.s32 0, %v299
    %v301 = vsel %vm295, %v300, %v299
    %vm302 = vcmp.lt.s32.totalorder %v214, 0
    %v303 = vsub.s32 0, %v214
    %v304 = vsel %vm302, %v303, %v214
    %v305 = vshrl.u32 %v304, 3
    %v306 = vand.u32 %v304, 7
    %v307 = vsub.s32 0, %v306
    %v308 = vsel %vm302, %v307, %v306
    %vm309 = vcmp.lt.s32.totalorder %v215, 0
    %v310 = vsub.s32 0, %v215
    %v311 = vsel %vm309, %v310, %v215
    %v312 = vshrl.u32 %v311, 3
    %v313 = vand.u32 %v311, 7
    %v314 = vsub.s32 0, %v313
    %v315 = vsel %vm309, %v314, %v313
    %vm316 = vcmp.lt.s32.totalorder %v216, 0
    %v317 = vsub.s32 0, %v216
    %v318 = vsel %vm316, %v317, %v216
    %v319 = vshrl.u32 %v318, 3
    %v320 = vand.u32 %v318, 7
    %v321 = vsub.s32 0, %v320
    %v322 = vsel %vm316, %v321, %v320
    %vm323 = vcmp.lt.s32.totalorder %v217, 0
    %v324 = vsub.s32 0, %v217
    %v325 = vsel %vm323, %v324, %v217
    %v326 = vshrl.u32 %v325, 3
    %v327 = vand.u32 %v325, 7
    %v328 = vsub.s32 0, %v327
    %v329 = vsel %vm323, %v328, %v327
    %vm330 = vcmp.ne.s32.totalorder %v224, 0
    %vm331 = vcmp.ne.s32.totalorder %v231, 0
    %vm332 = vcmp.ne.s32.totalorder %v238, 0
    %vm333 = vcmp.ne.s32.totalorder %v245, 0
    %vm334 = vcmp.ne.s32.totalorder %v252, 0
    %vm335 = vcmp.ne.s32.totalorder %v259, 0
    %vm336 = vcmp.ne.s32.totalorder %v266, 0
    %vm337 = vcmp.ne.s32.totalorder %v273, 0
    %vm338 = vcmp.ne.s32.totalorder %v280, 0
    %vm339 = vcmp.ne.s32.totalorder %v287, 0
    %vm340 = vcmp.ne.s32.totalorder %v294, 0
    %vm341 = vcmp.ne.s32.totalorder %v301, 0
    %vm342 = vcmp.ne.s32.totalorder %v308, 0
    %vm343 = vcmp.ne.s32.totalorder %v315, 0
    %vm344 = vcmp.ne.s32.totalorder %v322, 0
    %vm345 = vcmp.ne.s32.totalorder %v329, 0
    %vm346 = vcmp.lt.s32.totalorder %v224, 0
    %vm347 = vcmp.lt.s32.totalorder %v231, 0
    %vm348 = vcmp.lt.s32.totalorder %v238, 0
    %vm349 = vcmp.lt.s32.totalorder %v245, 0
    %vm350 = vcmp.lt.s32.totalorder %v252, 0
    %vm351 = vcmp.lt.s32.totalorder %v259, 0
    %vm352 = vcmp.lt.s32.totalorder %v266, 0
    %vm353 = vcmp.lt.s32.totalorder %v273, 0
    %vm354 = vcmp.lt.s32.totalorder %v280, 0
    %vm355 = vcmp.lt.s32.totalorder %v287, 0
    %vm356 = vcmp.lt.s32.totalorder %v294, 0
    %vm357 = vcmp.lt.s32.totalorder %v301, 0
    %vm358 = vcmp.lt.s32.totalorder %v308, 0
    %vm359 = vcmp.lt.s32.totalorder %v315, 0
    %vm360 = vcmp.lt.s32.totalorder %v322, 0
    %vm361 = vcmp.lt.s32.totalorder %v329, 0
    %vm362 = vmand %vm346, %vm330
    %vm363 = vmand %vm347, %vm331
    %vm364 = vmand %vm348, %vm332
    %vm365 = vmand %vm349, %vm333
    %vm366 = vmand %vm350, %vm334
    %vm367 = vmand %vm351, %vm335
    %vm368 = vmand %vm352, %vm336
    %vm369 = vmand %vm353, %vm337
    %vm370 = vmand %vm354, %vm338
    %vm371 = vmand %vm355, %vm339
    %vm372 = vmand %vm356, %vm340
    %vm373 = vmand %vm357, %vm341
    %vm374 = vmand %vm358, %vm342
    %vm375 = vmand %vm359, %vm343
    %vm376 = vmand %vm360, %vm344
    %vm377 = vmand %vm361, %vm345
    %v378 = vadd.s32 %v224, 8
    %v379 = vadd.s32 %v231, 8
    %v380 = vadd.s32 %v238, 8
    %v381 = vadd.s32 %v245, 8
    %v382 = vadd.s32 %v252, 8
    %v383 = vadd.s32 %v259, 8
    %v384 = vadd.s32 %v266, 8
    %v385 = vadd.s32 %v273, 8
    %v386 = vadd.s32 %v280, 8
    %v387 = vadd.s32 %v287, 8
    %v388 = vadd.s32 %v294, 8
    %v389 = vadd.s32 %v301, 8
    %v390 = vadd.s32 %v308, 8
    %v391 = vadd.s32 %v315, 8
    %v392 = vadd.s32 %v322, 8
    %v393 = vadd.s32 %v329, 8
    %v394 = vsel %vm362, %v378, %v224
    %v395 = vsel %vm363, %v379, %v231
    %v396 = vsel %vm364, %v380, %v238
    %v397 = vsel %vm365, %v381, %v245
    %v398 = vsel %vm366, %v382, %v252
    %v399 = vsel %vm367, %v383, %v259
    %v400 = vsel %vm368, %v384, %v266
    %v401 = vsel %vm369, %v385, %v273
    %v402 = vsel %vm370, %v386, %v280
    %v403 = vsel %vm371, %v387, %v287
    %v404 = vsel %vm372, %v388, %v294
    %v405 = vsel %vm373, %v389, %v301
    %v406 = vsel %vm374, %v390, %v308
    %v407 = vsel %vm375, %v391, %v315
    %v408 = vsel %vm376, %v392, %v322
    %v409 = vsel %vm377, %v393, %v329
    %v410 = vlaneseq
    %v411 = vand.u32 %v410, 127
    %vm412 = vcmp.eq.s32.totalorder %v394, %v411
    %vm413 = vcmp.eq.s32.totalorder %v395, %v411
    %vm414 = vcmp.eq.s32.totalorder %v396, %v411
    %vm415 = vcmp.eq.s32.totalorder %v397, %v411
    %vm416 = vcmp.eq.s32.totalorder %v398, %v411
    %vm417 = vcmp.eq.s32.totalorder %v399, %v411
    %vm418 = vcmp.eq.s32.totalorder %v400, %v411
    %vm419 = vcmp.eq.s32.totalorder %v401, %v411
    %vm420 = vcmp.eq.s32.totalorder %v402, %v411
    %vm421 = vcmp.eq.s32.totalorder %v403, %v411
    %vm422 = vcmp.eq.s32.totalorder %v404, %v411
    %vm423 = vcmp.eq.s32.totalorder %v405, %v411
    %vm424 = vcmp.eq.s32.totalorder %v406, %v411
    %vm425 = vcmp.eq.s32.totalorder %v407, %v411
    %vm426 = vcmp.eq.s32.totalorder %v408, %v411
    %vm427 = vcmp.eq.s32.totalorder %v409, %v411
    %v428 = vsel %vm412, 1, 0
    %v429 = vsel %vm413, 1, 0
    %v430 = vsel %vm414, 1, 0
    %v431 = vsel %vm415, 1, 0
    %v432 = vsel %vm416, 1, 0
    %v433 = vsel %vm417, 1, 0
    %v434 = vsel %vm418, 1, 0
    %v435 = vsel %vm419, 1, 0
    %v436 = vsel %vm420, 1, 0
    %v437 = vsel %vm421, 1, 0
    %v438 = vsel %vm422, 1, 0
    %v439 = vsel %vm423, 1, 0
    %v440 = vsel %vm424, 1, 0
    %v441 = vsel %vm425, 1, 0
    %v442 = vsel %vm426, 1, 0
    %v443 = vsel %vm427, 1, 0
    %v444 = vcvt.s32.f32 %v428
    %v445 = vcvt.s32.f32 %v429
    %v446 = vcvt.s32.f32 %v430
    %v447 = vcvt.s32.f32 %v431
    %v448 = vcvt.s32.f32 %v432
    %v449 = vcvt.s32.f32 %v433
    %v450 = vcvt.s32.f32 %v434
    %v451 = vcvt.s32.f32 %v435
    %v452 = vcvt.s32.f32 %v436
    %v453 = vcvt.s32.f32 %v437
    %v454 = vcvt.s32.f32 %v438
    %v455 = vcvt.s32.f32 %v439
    %v456 = vcvt.s32.f32 %v440
    %v457 = vcvt.s32.f32 %v441
    %v458 = vcvt.s32.f32 %v442
    %v459 = vcvt.s32.f32 %v443
    %vm460 = vcmp.lt.s32.totalorder %v411, 0
    %v461 = vsub.s32 0, %v411
    %v462 = vsel %vm460, %v461, %v411
    %v463 = vshrl.u32 %v462, 3
    %v464 = vand.u32 %v462, 7
    %v465 = vsub.s32 0, %v464
    %v466 = vsel %vm460, %v465, %v464
    %vm467 = vcmp.ne.s32.totalorder %v466, 0
    %vm468 = vcmp.lt.s32.totalorder %v466, 0
    %vm469 = vmand %vm468, %vm467
    %v470 = vadd.s32 %v466, 8
    %v471 = vsel %vm469, %v470, %v466
    %vm472 = vcmp.eq.s32.totalorder %v471, %v202
    %v473 = vsel %vm472, 1, 0
    %v474 = vcvt.s32.f32 %v473
    %475 = vmatprep.subr.mxu0 0.0
    %476 = vmatpush1.msra.mxu0 %v459
    %477 = vmatprep.subr.mxu0 0.0
    %478 = vmatpush1.msra.mxu0 %v458
    %479 = vmatprep.subr.mxu0 0.0
    %480 = vmatpush1.msra.mxu0 %v457
    %481 = vmatprep.subr.mxu0 0.0
    %482 = vmatpush1.msra.mxu0 %v456
    %483 = vmatprep.subr.mxu0 0.0
    %484 = vmatpush1.msra.mxu0 %v455
    %485 = vmatprep.subr.mxu0 0.0
    %486 = vmatpush1.msra.mxu0 %v454
    %487 = vmatprep.subr.mxu0 0.0
    %488 = vmatpush1.msra.mxu0 %v453
    %489 = vmatprep.subr.mxu0 0.0
    %490 = vmatpush1.msra.mxu0 %v452
    %491 = vmatprep.subr.mxu0 0.0
    %492 = vmatpush1.msra.mxu0 %v451
    %493 = vmatprep.subr.mxu0 0.0
    %494 = vmatpush1.msra.mxu0 %v450
    %495 = vmatprep.subr.mxu0 0.0
    %496 = vmatpush1.msra.mxu0 %v449
    %497 = vmatprep.subr.mxu0 0.0
    %498 = vmatpush1.msra.mxu0 %v448
    %499 = vmatprep.subr.mxu0 0.0
    %500 = vmatpush1.msra.mxu0 %v447
    %501 = vmatprep.subr.mxu0 0.0
    %502 = vmatpush1.msra.mxu0 %v446
    %503 = vmatprep.subr.mxu0 0.0
    %504 = vmatpush1.msra.mxu0 %v445
    %505 = vmatprep.subr.mxu0 0.0
    %506 = vmatpush1.msra.mxu0 %v444
    %507 = vmatprep.subr.mxu0 0.0
    %508 = vmatpush2.msra.mxu0 0.0
    %509 = vmatprep.subr.mxu0 0.0
    %510 = vmatpush2.msra.mxu0 0.0
    %511 = vmatprep.subr.mxu0 0.0
    %512 = vmatpush2.msra.mxu0 0.0
    %513 = vmatprep.subr.mxu0 0.0
    %514 = vmatpush2.msra.mxu0 0.0
    %515 = vmatprep.subr.mxu0 0.0
    %516 = vmatpush2.msra.mxu0 0.0
    %517 = vmatprep.subr.mxu0 0.0
    %518 = vmatpush2.msra.mxu0 0.0
    %519 = vmatprep.subr.mxu0 0.0
    %520 = vmatpush2.msra.mxu0 0.0
    %521 = vmatprep.subr.mxu0 0.0
    %522 = vmatpush2.msra.mxu0 0.0
    %523 = vmatprep.subr.mxu0 0.0
    %524 = vmatpush2.msra.mxu0 0.0
    %525 = vmatprep.subr.mxu0 0.0
    %526 = vmatpush2.msra.mxu0 0.0
    %527 = vmatprep.subr.mxu0 0.0
    %528 = vmatpush2.msra.mxu0 0.0
    %529 = vmatprep.subr.mxu0 0.0
    %530 = vmatpush2.msra.mxu0 0.0
    %531 = vmatprep.subr.mxu0 0.0
    %532 = vmatpush2.msra.mxu0 0.0
    %533 = vmatprep.subr.mxu0 0.0
    %534 = vmatpush2.msra.mxu0 0.0
    %535 = vmatprep.subr.mxu0 0.0
    %536 = vmatpush2.msra.mxu0 0.0
    %537 = vmatprep.subr.mxu0 0.0
    %538 = vmatpush2.msra.mxu0 0.0
    %539 = vmatprep.mubr.f32.mxu0 0.0
    %540 = vmatmul.mubr.f32.gmra.mxu0 %v187
    %v541 = vpop.f32.mrf.mxu0
    %v542 = vadd.f32 0.0, %v541
    %v543 = vpop.f32.mrf.mxu0
    %544 = vdwg.mxu0
    %v545 = vrcp.pop 512.0
    %v546 = vmul.f32 %v542, %v545
    %547 = vmatprep.subr.mxu0 0.0
    %548 = vmatpush1.msra.mxu0 %v459
    %549 = vmatprep.subr.mxu0 0.0
    %550 = vmatpush1.msra.mxu0 %v458
    %551 = vmatprep.subr.mxu0 0.0
    %552 = vmatpush1.msra.mxu0 %v457
    %553 = vmatprep.subr.mxu0 0.0
    %554 = vmatpush1.msra.mxu0 %v456
    %555 = vmatprep.subr.mxu0 0.0
    %556 = vmatpush1.msra.mxu0 %v455
    %557 = vmatprep.subr.mxu0 0.0
    %558 = vmatpush1.msra.mxu0 %v454
    %559 = vmatprep.subr.mxu0 0.0
    %560 = vmatpush1.msra.mxu0 %v453
    %561 = vmatprep.subr.mxu0 0.0
    %562 = vmatpush1.msra.mxu0 %v452
    %563 = vmatprep.subr.mxu0 0.0
    %564 = vmatpush1.msra.mxu0 %v451
    %565 = vmatprep.subr.mxu0 0.0
    %566 = vmatpush1.msra.mxu0 %v450
    %567 = vmatprep.subr.mxu0 0.0
    %568 = vmatpush1.msra.mxu0 %v449
    %569 = vmatprep.subr.mxu0 0.0
    %570 = vmatpush1.msra.mxu0 %v448
    %571 = vmatprep.subr.mxu0 0.0
    %572 = vmatpush1.msra.mxu0 %v447
    %573 = vmatprep.subr.mxu0 0.0
    %574 = vmatpush1.msra.mxu0 %v446
    %575 = vmatprep.subr.mxu0 0.0
    %576 = vmatpush1.msra.mxu0 %v445
    %577 = vmatprep.subr.mxu0 0.0
    %578 = vmatpush1.msra.mxu0 %v444
    %579 = vmatprep.subr.mxu0 0.0
    %580 = vmatpush2.msra.mxu0 0.0
    %581 = vmatprep.subr.mxu0 0.0
    %582 = vmatpush2.msra.mxu0 0.0
    %583 = vmatprep.subr.mxu0 0.0
    %584 = vmatpush2.msra.mxu0 0.0
    %585 = vmatprep.subr.mxu0 0.0
    %586 = vmatpush2.msra.mxu0 0.0
    %587 = vmatprep.subr.mxu0 0.0
    %588 = vmatpush2.msra.mxu0 0.0
    %589 = vmatprep.subr.mxu0 0.0
    %590 = vmatpush2.msra.mxu0 0.0
    %591 = vmatprep.subr.mxu0 0.0
    %592 = vmatpush2.msra.mxu0 0.0
    %593 = vmatprep.subr.mxu0 0.0
    %594 = vmatpush2.msra.mxu0 0.0
    %595 = vmatprep.subr.mxu0 0.0
    %596 = vmatpush2.msra.mxu0 0.0
    %597 = vmatprep.subr.mxu0 0.0
    %598 = vmatpush2.msra.mxu0 0.0
    %599 = vmatprep.subr.mxu0 0.0
    %600 = vmatpush2.msra.mxu0 0.0
    %601 = vmatprep.subr.mxu0 0.0
    %602 = vmatpush2.msra.mxu0 0.0
    %603 = vmatprep.subr.mxu0 0.0
    %604 = vmatpush2.msra.mxu0 0.0
    %605 = vmatprep.subr.mxu0 0.0
    %606 = vmatpush2.msra.mxu0 0.0
    %607 = vmatprep.subr.mxu0 0.0
    %608 = vmatpush2.msra.mxu0 0.0
    %609 = vmatprep.subr.mxu0 0.0
    %610 = vmatpush2.msra.mxu0 0.0
    %611 = vmatprep.mubr.f32.mxu0 0.0
    %612 = vmatmul.mubr.f32.gmra.mxu0 %v200
    %v613 = vpop.f32.mrf.mxu0
    %v614 = vadd.f32 0.0, %v613
    %v615 = vpop.f32.mrf.mxu0
    %616 = vdwg.mxu0
    %v617 = vmul.f32 %v614, %v545
    %v618 = vmul.f32 %v546, %v546
    %v619 = vsub.f32 %v617, %v618
    %v620 = vld [vmem:[%s2] sm:$0x1]
    %v621 = vadd.f32 %v619, 1e-05
    %v622 = vrsqrt.pop %v621
    %v623 = vmul.f32 %v620, %v622
    %v624 = vld [vmem:[%s3] sm:$0x1]
    %v625 = vmul.f32 %v546, %v623
    %v626 = vsub.f32 %v624, %v625
    %vm627 = vcmask 64512
    %v629 = vsel %vm627, %v623, 0
    %631 = vmatprep.subr.mxu0 0.0
    %632 = vmatpush1.msra.mxu0 0.0
    %633 = vmatprep.subr.mxu0 0.0
    %634 = vmatpush1.msra.mxu0 0.0
    %635 = vmatprep.subr.mxu0 0.0
    %636 = vmatpush1.msra.mxu0 0.0
    %637 = vmatprep.subr.mxu0 0.0
    %638 = vmatpush1.msra.mxu0 0.0
    %639 = vmatprep.subr.mxu0 0.0
    %640 = vmatpush1.msra.mxu0 0.0
    %641 = vmatprep.subr.mxu0 0.0
    %642 = vmatpush1.msra.mxu0 0.0
    %643 = vmatprep.subr.mxu0 0.0
    %644 = vmatpush1.msra.mxu0 0.0
    %645 = vmatprep.subr.mxu0 0.0
    %646 = vmatpush1.msra.mxu0 0.0
    %647 = vmatprep.subr.mxu0 0.0
    %648 = vmatpush1.msra.mxu0 0.0
    %649 = vmatprep.subr.mxu0 0.0
    %650 = vmatpush1.msra.mxu0 0.0
    %651 = vmatprep.subr.mxu0 0.0
    %652 = vmatpush1.msra.mxu0 0.0
    %653 = vmatprep.subr.mxu0 0.0
    %654 = vmatpush1.msra.mxu0 0.0
    %655 = vmatprep.subr.mxu0 0.0
    %656 = vmatpush1.msra.mxu0 0.0
    %657 = vmatprep.subr.mxu0 0.0
    %658 = vmatpush1.msra.mxu0 0.0
    %659 = vmatprep.subr.mxu0 0.0
    %660 = vmatpush1.msra.mxu0 0.0
    %661 = vmatprep.subr.mxu0 0.0
    %662 = vmatpush1.msra.mxu0 %v474
    %663 = vmatprep.subr.mxu0 0.0
    %664 = vmatpush2.msra.mxu0 0.0
    %665 = vmatprep.subr.mxu0 0.0
    %666 = vmatpush2.msra.mxu0 0.0
    %667 = vmatprep.subr.mxu0 0.0
    %668 = vmatpush2.msra.mxu0 0.0
    %669 = vmatprep.subr.mxu0 0.0
    %670 = vmatpush2.msra.mxu0 0.0
    %671 = vmatprep.subr.mxu0 0.0
    %672 = vmatpush2.msra.mxu0 0.0
    %673 = vmatprep.subr.mxu0 0.0
    %674 = vmatpush2.msra.mxu0 0.0
    %675 = vmatprep.subr.mxu0 0.0
    %676 = vmatpush2.msra.mxu0 0.0
    %677 = vmatprep.subr.mxu0 0.0
    %678 = vmatpush2.msra.mxu0 0.0
    %679 = vmatprep.subr.mxu0 0.0
    %680 = vmatpush2.msra.mxu0 0.0
    %681 = vmatprep.subr.mxu0 0.0
    %682 = vmatpush2.msra.mxu0 0.0
    %683 = vmatprep.subr.mxu0 0.0
    %684 = vmatpush2.msra.mxu0 0.0
    %685 = vmatprep.subr.mxu0 0.0
    %686 = vmatpush2.msra.mxu0 0.0
    %687 = vmatprep.subr.mxu0 0.0
    %688 = vmatpush2.msra.mxu0 0.0
    %689 = vmatprep.subr.mxu0 0.0
    %690 = vmatpush2.msra.mxu0 0.0
    %691 = vmatprep.subr.mxu0 0.0
    %692 = vmatpush2.msra.mxu0 0.0
    %693 = vmatprep.subr.mxu0 0.0
    %694 = vmatpush2.msra.mxu0 0.0
    %695 = vmatprep.mubr.f32.mxu0 0.0
    %696 = vmatmul.mubr.f32.gmra.mxu0 %v629
    %v697 = vpop.f32.mrf.mxu0
    %v698 = vadd.f32 0.0, %v697
    %v699 = vpop.f32.mrf.mxu0
    %700 = vdwg.mxu0
    %v702 = vsel %vm627, %v626, 0
    %704 = vmatprep.subr.mxu0 0.0
    %705 = vmatpush1.msra.mxu0 0.0
    %706 = vmatprep.subr.mxu0 0.0
    %707 = vmatpush1.msra.mxu0 0.0
    %708 = vmatprep.subr.mxu0 0.0
    %709 = vmatpush1.msra.mxu0 0.0
    %710 = vmatprep.subr.mxu0 0.0
    %711 = vmatpush1.msra.mxu0 0.0
    %712 = vmatprep.subr.mxu0 0.0
    %713 = vmatpush1.msra.mxu0 0.0
    %714 = vmatprep.subr.mxu0 0.0
    %715 = vmatpush1.msra.mxu0 0.0
    %716 = vmatprep.subr.mxu0 0.0
    %717 = vmatpush1.msra.mxu0 0.0
    %718 = vmatprep.subr.mxu0 0.0
    %719 = vmatpush1.msra.mxu0 0.0
    %720 = vmatprep.subr.mxu0 0.0
    %721 = vmatpush1.msra.mxu0 0.0
    %722 = vmatprep.subr.mxu0 0.0
    %723 = vmatpush1.msra.mxu0 0.0
    %724 = vmatprep.subr.mxu0 0.0
    %725 = vmatpush1.msra.mxu0 0.0
    %726 = vmatprep.subr.mxu0 0.0
    %727 = vmatpush1.msra.mxu0 0.0
    %728 = vmatprep.subr.mxu0 0.0
    %729 = vmatpush1.msra.mxu0 0.0
    %730 = vmatprep.subr.mxu0 0.0
    %731 = vmatpush1.msra.mxu0 0.0
    %732 = vmatprep.subr.mxu0 0.0
    %733 = vmatpush1.msra.mxu0 0.0
    %734 = vmatprep.subr.mxu0 0.0
    %735 = vmatpush1.msra.mxu0 %v474
    %736 = vmatprep.subr.mxu0 0.0
    %737 = vmatpush2.msra.mxu0 0.0
    %738 = vmatprep.subr.mxu0 0.0
    %739 = vmatpush2.msra.mxu0 0.0
    %740 = vmatprep.subr.mxu0 0.0
    %741 = vmatpush2.msra.mxu0 0.0
    %742 = vmatprep.subr.mxu0 0.0
    %743 = vmatpush2.msra.mxu0 0.0
    %744 = vmatprep.subr.mxu0 0.0
    %745 = vmatpush2.msra.mxu0 0.0
    %746 = vmatprep.subr.mxu0 0.0
    %747 = vmatpush2.msra.mxu0 0.0
    %748 = vmatprep.subr.mxu0 0.0
    %749 = vmatpush2.msra.mxu0 0.0
    %750 = vmatprep.subr.mxu0 0.0
    %751 = vmatpush2.msra.mxu0 0.0
    %752 = vmatprep.subr.mxu0 0.0
    %753 = vmatpush2.msra.mxu0 0.0
    %754 = vmatprep.subr.mxu0 0.0
    %755 = vmatpush2.msra.mxu0 0.0
    %756 = vmatprep.subr.mxu0 0.0
    %757 = vmatpush2.msra.mxu0 0.0
    %758 = vmatprep.subr.mxu0 0.0
    %759 = vmatpush2.msra.mxu0 0.0
    %760 = vmatprep.subr.mxu0 0.0
    %761 = vmatpush2.msra.mxu0 0.0
    %762 = vmatprep.subr.mxu0 0.0
    %763 = vmatpush2.msra.mxu0 0.0
    %764 = vmatprep.subr.mxu0 0.0
    %765 = vmatpush2.msra.mxu0 0.0
    %766 = vmatprep.subr.mxu0 0.0
    %767 = vmatpush2.msra.mxu0 0.0
    %768 = vmatprep.mubr.f32.mxu0 0.0
    %769 = vmatmul.mubr.f32.gmra.mxu0 %v702
    %v770 = vpop.f32.mrf.mxu0
    %v771 = vadd.f32 0.0, %v770
    %v772 = vpop.f32.mrf.mxu0
    %773 = vdwg.mxu0
    %v774 = vlaneseq
    %v775 = vshrl.u32 %v774, 7
    %v776 = vsub.s32 0, %v775
    %v777 = vrot.slane %v698, %v776
    %v778 = vmul.f32 %v161, %v777
    %v779 = vmul.f32 %v166, %v777
    %v780 = vmul.f32 %v171, %v777
    %v781 = vmul.f32 %v176, %v777
    %v782 = vlaneseq
    %v783 = vshrl.u32 %v782, 7
    %v784 = vsub.s32 0, %v783
    %v785 = vrot.slane %v771, %v784
    %v786 = vadd.f32 %v778, %v785
    %v787 = vadd.f32 %v779, %v785
    %v788 = vadd.f32 %v780, %v785
    %v789 = vadd.f32 %v781, %v785
    %v790 = vmax.f32 %v786, 0.0
    %v791 = vmax.f32 %v787, 0.0
    %v792 = vmax.f32 %v788, 0.0
    %v793 = vmax.f32 %v789, 0.0
    %794 = vst [vmem:[#allocation7] sm:$0xff] %v790
    %795 = vst [vmem:[#allocation7 + $0x8] sm:$0xff] %v791
    %796 = vst [vmem:[#allocation7 + $0x10] sm:$0xff] %v792
    %797 = vst [vmem:[#allocation7 + $0x18] sm:$0xff] %v793
    // Predicated region
    $region26: #{tpu_custom_call.1} parent=1 // pred_check
      _
    $region27: #{tpu_custom_call.1} parent=1 // pred_check_branch
      %799 = sbr.rel (0) target = $region29
    $region28: #{tpu_custom_call.1} parent=1 // pred_region
      %s801 = ssub.s32 512, 512
      %802 = vsyncadd [#allocation4], %s801
      %s803 = sshll.u32 [#allocation7], 4
      %s804 = int_to_ptr.vmem [resolvable:$true] %s803
      %809 = dma.vmem_to_hbm [thread:$0]  %s804, 512, %s4, [#allocation4], 128, 128, 8
    $region29: #{tpu_custom_call.1} parent=1 // pred_fallthru
      _
    // Predicated region
    $region30: #{tpu_custom_call.1} parent=1 // pred_check
      _
    $region31: #{tpu_custom_call.1} parent=1 // pred_check_branch
      %811 = sbr.rel (0) target = $region33
    $region32: #{tpu_custom_call.1} parent=1 // pred_region
      %812 = dma.done [#allocation4], 512
    $region33: #{tpu_custom_call.1} parent=1 // pred_fallthru
      _
    %813 = vsyncpa [#allocation3], 1
    %814 = vsyncpa [#allocation6], 1
    %815 = vsyncpa [#allocation4], 1

</llo_original>
